<compile_context>
chip_gen: v7x
topology: tpu7x:2x2x1
jax: 0.10.0
libtpu: 0.0.40
codegen_flags: <defaults>
</compile_context>

<pallas_src>
import functools

import jax
import jax.numpy as jnp
from jax.experimental import pallas as pl
from jax.experimental.pallas import tpu as pltpu


def _umerge_kernel(over_ref, up_ref, w_ref, b_ref, out_ref, *,
                   rows, width, c_in, c_out, c_over):
    """Fused convT(2,2,stride=2) + bias + pixel-shuffle + channel concat.

    over_ref: (1, 2*rows, width, 2*c_over)   cropped skip, lanes = (dj, ch)
    up_ref:   (1, rows*width, c_in)          flattened (i, j) rows
    w_ref:    (c_in, 4*c_out)                lanes = (di, dj, co), co fastest
    b_ref:    (1, 4*c_out)                   f32, tiled 4x over (di, dj)
    out_ref:  (1, 2*rows, width, 2*(c_over+c_out))  lanes = (dj, [over|conv])
    """
    c_total = c_over + c_out

    # MXU matmul, f32 accumulation, f32 bias epilogue.
    x = up_ref[0].astype(w_ref.dtype)                       # (M, K)
    y = jnp.dot(x, w_ref[...], preferred_element_type=jnp.float32)
    y = y + b_ref[...].astype(jnp.float32)                  # (M, 4*c_out)
    y = y.astype(out_ref.dtype)

    # Split M back into (row, col) and the N lanes into the two di taps.
    y = y.reshape(rows, width, 4 * c_out)                   # (r, j, (di,dj,co))
    y0 = y[:, :, : 2 * c_out]                               # di = 0, lanes (dj, co)
    y1 = y[:, :, 2 * c_out:]                                # di = 1, lanes (dj, co)

    ov = over_ref[0].reshape(rows, 2, width, 2 * c_over)    # (r, di, j, (dj, ch))
    ov0 = ov[:, 0]
    ov1 = ov[:, 1]

    def mix(ov_d, y_d):
        # Output lane order within a column pair: [over(dj=0), conv(dj=0),
        #                                          over(dj=1), conv(dj=1)]
        return jnp.concatenate(
            [ov_d[..., :c_over], y_d[..., :c_out],
             ov_d[..., c_over:], y_d[..., c_out:]], axis=-1)

    rows0 = mix(ov0, y0)                                    # output rows 2r
    rows1 = mix(ov1, y1)                                    # output rows 2r+1
    out = jnp.stack([rows0, rows1], axis=1)                 # (r, di, j, 2*c_total)
    out_ref[...] = out.reshape(1, 2 * rows, width, 2 * c_total)


def _pick_rows(h, w, c_in, c_over, c_out, itemsize):
    """Largest divisor of h giving an M tile near ~512 rows within a VMEM budget."""
    c_total = c_over + c_out
    target_m = 512
    vmem_budget = 12 << 20  # conservative: fits v7x's 32 MiB scoped default
    candidates = [r for r in range(1, h + 1)
                  if h % r == 0 and ((r * w) % 8 == 0 or r == h)]
    best = candidates[0]
    for r in candidates:
        m = r * w
        est = (2 * (m * c_in + 4 * m * c_over + 4 * m * c_total)
               + 2 * c_in * 4 * c_out) * itemsize
        if est > vmem_budget:
            break
        best = r
        if m >= target_m:
            break
    return best


def umerge_forward_nhwc(over, up, weight, bias, *, compute_dtype=None):
    """NHWC fast path.  over: (B,Ho,Wo,C_over), up: (B,h,w,C_in),
    weight: (C_in, C_out, 2, 2) (PyTorch ConvTranspose2d layout), bias: (C_out,).
    Returns (B, 2h, 2w, C_over + C_out) in NHWC."""
    B, h, w, c_in = up.shape
    c_out = weight.shape[1]
    assert weight.shape == (c_in, c_out, 2, 2), weight.shape
    Ho, Wo, c_over = over.shape[1], over.shape[2], over.shape[3]
    assert over.dtype == up.dtype
    H, W = 2 * h, 2 * w
    assert Ho >= H and Wo >= W, "crop path requires over >= upsampled up"
    c_total = c_over + c_out
    out_dtype = up.dtype

    # Center crop of the skip tensor (PyTorch floor split).  No-op if equal.
    if Ho != H:
        bh = (Ho - H) // 2
        over = over[:, bh:bh + H, :, :]
    if Wo != W:
        bw = (Wo - W) // 2
        over = over[:, :, bw:bw + W, :]

    # Weight -> (K, N), N flattened as (di, dj, co) with co fastest; bias tiled 4x.
    w2 = jnp.transpose(weight, (0, 2, 3, 1)).reshape(c_in, 4 * c_out)
    if compute_dtype is not None:
        w2 = w2.astype(compute_dtype)
    b2 = jnp.tile(bias, 4).reshape(1, 4 * c_out).astype(jnp.float32)

    # Free row-major views (no HBM data movement).
    up2d = up.reshape(B, h * w, c_in)                 # (B, M_total, K)
    over_v = over.reshape(B, H, w, 2 * c_over)        # lanes = (dj, ch)

    itemsize = jnp.dtype(up.dtype).itemsize
    R = _pick_rows(h, w, c_in, c_over, c_out, itemsize)
    grid = (B, h // R)

    M_total, N = B * h * w, 4 * c_out
    cost = pl.CostEstimate(
        flops=2 * M_total * c_in * N,
        transcendentals=0,
        bytes_accessed=(up2d.size * itemsize
                        + over_v.size * itemsize
                        + w2.size * jnp.dtype(w2.dtype).itemsize
                        + b2.size * 4
                        + B * H * W * c_total * jnp.dtype(out_dtype).itemsize),
    )

    kernel = functools.partial(_umerge_kernel, rows=R, width=w,
                               c_in=c_in, c_out=c_out, c_over=c_over)

    out_v = pl.pallas_call(
        kernel,
        out_shape=jax.ShapeDtypeStruct((B, H, w, 2 * c_total), out_dtype),
        grid=grid,
        in_specs=[
            pl.BlockSpec((1, 2 * R, w, 2 * c_over), lambda b, t: (b, t, 0, 0)),
            pl.BlockSpec((1, R * w, c_in), lambda b, t: (b, t, 0)),
            pl.BlockSpec((c_in, 4 * c_out), lambda b, t: (0, 0)),
            pl.BlockSpec((1, 4 * c_out), lambda b, t: (0, 0)),
        ],
        out_specs=pl.BlockSpec((1, 2 * R, w, 2 * c_total),
                               lambda b, t: (b, t, 0, 0)),
        compiler_params=pltpu.CompilerParams(
            dimension_semantics=("parallel", "parallel")),
        cost_estimate=cost,
    )(over_v, up2d, w2, b2)

    return out_v.reshape(B, H, W, c_total)            # free view back to NHWC


def umerge_forward(over_nchw, up_nchw, weight, bias, *, compute_dtype=None):
    """NCHW wrapper matching the PyTorch module interface exactly.
    The transposes here are for drop-in parity only; keep NHWC end-to-end in a
    real network to avoid the extra HBM passes."""
    over = jnp.transpose(over_nchw, (0, 2, 3, 1))
    up = jnp.transpose(up_nchw, (0, 2, 3, 1))
    out = umerge_forward_nhwc(over, up, weight, bias, compute_dtype=compute_dtype)
    return jnp.transpose(out, (0, 3, 1, 2))


def umerge_reference(over, up, weight, bias):
    """Pure-JAX NCHW reference transcribing the PyTorch forward (bilinear=False,
    padding=False)."""
    B, c_in, h, w = up.shape
    c_out = weight.shape[1]
    t = jnp.einsum('bcij,cokl->boikjl', up, weight)       # (B, Co, h, 2, w, 2)
    upsamp = t.reshape(B, c_out, 2 * h, 2 * w) + bias[None, :, None, None]
    Ho, Wo = over.shape[2], over.shape[3]
    H, W = 2 * h, 2 * w
    bh = (Ho - H) // 2
    bw = (Wo - W) // 2
    over_c = over[:, :, bh:bh + H, bw:bw + W]
    return jnp.concatenate([over_c, upsamp], axis=1)


if __name__ == "__main__":
    key = jax.random.PRNGKey(0)
    k1, k2, k3, k4 = jax.random.split(key, 4)

    # umerge(nchannels=4): up has 4 channels, upsampled to 2; skip has 2.
    B, C, h, w = 2, 4, 8, 8
    c_out = C // 2
    c_over = c_out
    Ho, Wo = 2 * h + 2, 2 * w + 3          # exercise the center crop (even + odd)

    up = jax.random.normal(k1, (B, C, h, w), dtype=jnp.float32)
    over = jax.random.normal(k2, (B, c_over, Ho, Wo), dtype=jnp.float32)
    weight = jax.random.normal(k3, (C, c_out, 2, 2), dtype=jnp.float32) * 0.1
    bias = jax.random.normal(k4, (c_out,), dtype=jnp.float32) * 0.1

    out = jax.jit(umerge_forward)(over, up, weight, bias)
    out = jax.block_until_ready(out)

    ref = umerge_reference(over, up, weight, bias)
    assert out.shape == (B, c_over + c_out, 2 * h, 2 * w), out.shape
    err = float(jnp.max(jnp.abs(out - ref)))
    assert err < 1e-4, f"max abs err {err}"
    print("KERNEL_OK")
</pallas_src>

<mosaic_0001>
module attributes {stable_mosaic.version = 11 : i64} {
  func.func @_umerge_kernel(%arg0: i32, %arg1: i32, %arg2: memref<1x16x8x4xf32, #tpu.memory_space<vmem>>, %arg3: memref<1x64x4xf32, #tpu.memory_space<vmem>>, %arg4: memref<4x8xf32, #tpu.memory_space<vmem>>, %arg5: memref<1x8xf32, #tpu.memory_space<vmem>>, %arg6: memref<1x16x8x8xf32, #tpu.memory_space<vmem>>) attributes {dimension_semantics = [#tpu.dimension_semantics<parallel>, #tpu.dimension_semantics<parallel>], iteration_bounds = array<i64: 2, 1>, scalar_prefetch = 0 : i64, scratch_operands = 0 : i64, tpu.core_type = #tpu.core_type<tc>, window_params = [{transform_indices = @transform_0, window_bounds = array<i64: 1, 16, 8, 4>}, {transform_indices = @transform_1, window_bounds = array<i64: 1, 64, 4>}, {pipeline_mode = #tpu.pipeline_mode<synchronous>, transform_indices = @transform_2, window_bounds = array<i64: 4, 8>}, {pipeline_mode = #tpu.pipeline_mode<synchronous>, transform_indices = @transform_3, window_bounds = array<i64: 1, 8>}, {transform_indices = @transform_4, window_bounds = array<i64: 1, 16, 8, 8>}]} {
    %c0 = arith.constant 0 : index
    %c0_0 = arith.constant 0 : index
    %c0_1 = arith.constant 0 : index
    %0 = vector.load %arg3[%c0, %c0_0, %c0_1] : memref<1x64x4xf32, #tpu.memory_space<vmem>>, vector<1x64x4xf32>
    %1 = vector.shape_cast %0 : vector<1x64x4xf32> to vector<64x4xf32>
    %c0_2 = arith.constant 0 : index
    %c0_3 = arith.constant 0 : index
    %2 = vector.load %arg4[%c0_2, %c0_3] : memref<4x8xf32, #tpu.memory_space<vmem>>, vector<4x8xf32>
    %cst = arith.constant dense<0.000000e+00> : vector<64x8xf32>
    %3 = tpu.matmul %1, %2, %cst {dimension_numbers = #tpu.dot_dimension_numbers<[1], [0], [0], [1], [0, 0, 1, 1], [], []>} : vector<64x4xf32>, vector<4x8xf32>, vector<64x8xf32> -> vector<64x8xf32>
    %c0_4 = arith.constant 0 : index
    %c0_5 = arith.constant 0 : index
    %4 = vector.load %arg5[%c0_4, %c0_5] : memref<1x8xf32, #tpu.memory_space<vmem>>, vector<1x8xf32>
    %5 = vector.broadcast %4 : vector<1x8xf32> to vector<64x8xf32>
    %6 = arith.addf %3, %5 : vector<64x8xf32>
    %7 = vector.shape_cast %6 : vector<64x8xf32> to vector<8x8x8xf32>
    %8 = vector.extract_strided_slice %7 {offsets = [0, 0, 0], sizes = [8, 8, 4], strides = [1, 1, 1]} : vector<8x8x8xf32> to vector<8x8x4xf32>
    %9 = vector.extract_strided_slice %7 {offsets = [0, 0, 4], sizes = [8, 8, 4], strides = [1, 1, 1]} : vector<8x8x8xf32> to vector<8x8x4xf32>
    %c0_6 = arith.constant 0 : index
    %c0_7 = arith.constant 0 : index
    %c0_8 = arith.constant 0 : index
    %c0_9 = arith.constant 0 : index
    %10 = vector.load %arg2[%c0_6, %c0_7, %c0_8, %c0_9] : memref<1x16x8x4xf32, #tpu.memory_space<vmem>>, vector<1x16x8x4xf32>
    %11 = vector.shape_cast %10 : vector<1x16x8x4xf32> to vector<16x8x4xf32>
    %12 = vector.shape_cast %11 : vector<16x8x4xf32> to vector<8x2x8x4xf32>
    %13 = vector.extract_strided_slice %12 {offsets = [0, 0, 0, 0], sizes = [8, 1, 8, 4], strides = [1, 1, 1, 1]} : vector<8x2x8x4xf32> to vector<8x1x8x4xf32>
    %14 = vector.shape_cast %13 : vector<8x1x8x4xf32> to vector<8x8x4xf32>
    %15 = vector.extract_strided_slice %12 {offsets = [0, 1, 0, 0], sizes = [8, 1, 8, 4], strides = [1, 1, 1, 1]} : vector<8x2x8x4xf32> to vector<8x1x8x4xf32>
    %16 = vector.shape_cast %15 : vector<8x1x8x4xf32> to vector<8x8x4xf32>
    %17 = vector.extract_strided_slice %14 {offsets = [0, 0, 0], sizes = [8, 8, 2], strides = [1, 1, 1]} : vector<8x8x4xf32> to vector<8x8x2xf32>
    %18 = vector.extract_strided_slice %8 {offsets = [0, 0, 0], sizes = [8, 8, 2], strides = [1, 1, 1]} : vector<8x8x4xf32> to vector<8x8x2xf32>
    %19 = vector.extract_strided_slice %14 {offsets = [0, 0, 2], sizes = [8, 8, 2], strides = [1, 1, 1]} : vector<8x8x4xf32> to vector<8x8x2xf32>
    %20 = vector.extract_strided_slice %8 {offsets = [0, 0, 2], sizes = [8, 8, 2], strides = [1, 1, 1]} : vector<8x8x4xf32> to vector<8x8x2xf32>
    %21 = tpu.concatenate %17, %18, %19, %20 in 2 : vector<8x8x2xf32>, vector<8x8x2xf32>, vector<8x8x2xf32>, vector<8x8x2xf32> -> vector<8x8x8xf32>
    %22 = vector.extract_strided_slice %16 {offsets = [0, 0, 0], sizes = [8, 8, 2], strides = [1, 1, 1]} : vector<8x8x4xf32> to vector<8x8x2xf32>
    %23 = vector.extract_strided_slice %9 {offsets = [0, 0, 0], sizes = [8, 8, 2], strides = [1, 1, 1]} : vector<8x8x4xf32> to vector<8x8x2xf32>
    %24 = vector.extract_strided_slice %16 {offsets = [0, 0, 2], sizes = [8, 8, 2], strides = [1, 1, 1]} : vector<8x8x4xf32> to vector<8x8x2xf32>
    %25 = vector.extract_strided_slice %9 {offsets = [0, 0, 2], sizes = [8, 8, 2], strides = [1, 1, 1]} : vector<8x8x4xf32> to vector<8x8x2xf32>
    %26 = tpu.concatenate %22, %23, %24, %25 in 2 : vector<8x8x2xf32>, vector<8x8x2xf32>, vector<8x8x2xf32>, vector<8x8x2xf32> -> vector<8x8x8xf32>
    %27 = vector.shape_cast %21 : vector<8x8x8xf32> to vector<8x1x8x8xf32>
    %28 = vector.shape_cast %26 : vector<8x8x8xf32> to vector<8x1x8x8xf32>
    %29 = tpu.concatenate %27, %28 in 1 : vector<8x1x8x8xf32>, vector<8x1x8x8xf32> -> vector<8x2x8x8xf32>
    %30 = vector.shape_cast %29 : vector<8x2x8x8xf32> to vector<1x16x8x8xf32>
    %c0_10 = arith.constant 0 : index
    %c0_11 = arith.constant 0 : index
    %c0_12 = arith.constant 0 : index
    %c0_13 = arith.constant 0 : index
    %31 = vector.load %arg6[%c0_10, %c0_11, %c0_12, %c0_13] : memref<1x16x8x8xf32, #tpu.memory_space<vmem>>, vector<1x16x8x8xf32>
    tpu.vector_store %arg6[%c0_10, %c0_11, %c0_12, %c0_13], %30 {strides = array<i32>} : memref<1x16x8x8xf32, #tpu.memory_space<vmem>>, vector<1x16x8x8xf32>,
    return
  }
  func.func @transform_0(%arg0: i32, %arg1: i32) -> (i32, i32, i32, i32) {
    %c0_i32 = arith.constant 0 : i32
    %c0_i32_0 = arith.constant 0 : i32
    %c0_i32_1 = arith.constant 0 : i32
    return %arg0, %arg1, %c0_i32, %c0_i32_0 : i32, i32, i32, i32
  }
  func.func @transform_1(%arg0: i32, %arg1: i32) -> (i32, i32, i32) {
    %c0_i32 = arith.constant 0 : i32
    %c0_i32_0 = arith.constant 0 : i32
    return %arg0, %arg1, %c0_i32 : i32, i32, i32
  }
  func.func @transform_2(%arg0: i32, %arg1: i32) -> (i32, i32) {
    %c0_i32 = arith.constant 0 : i32
    %c0_i32_0 = arith.constant 0 : i32
    %c0_i32_1 = arith.constant 0 : i32
    return %c0_i32, %c0_i32_0 : i32, i32
  }
  func.func @transform_3(%arg0: i32, %arg1: i32) -> (i32, i32) {
    %c0_i32 = arith.constant 0 : i32
    %c0_i32_0 = arith.constant 0 : i32
    %c0_i32_1 = arith.constant 0 : i32
    return %c0_i32, %c0_i32_0 : i32, i32
  }
  func.func @transform_4(%arg0: i32, %arg1: i32) -> (i32, i32, i32, i32) {
    %c0_i32 = arith.constant 0 : i32
    %c0_i32_0 = arith.constant 0 : i32
    %c0_i32_1 = arith.constant 0 : i32
    return %arg0, %arg1, %c0_i32, %c0_i32_0 : i32, i32, i32, i32
  }
}

</mosaic_0001>

<llo_original>
// kernel: tile.8
$region0: #{tile.8}
  #allocation0 [shape = 's32[1]{0}', space=sflag, size = 0x4, scoped, tag = 'scoped memory for tile.8']
  %s0 = inlined_call_operand.vmem [shape: f32[2], index: 0, kind: input, shape index: {}]
  %s1 = inlined_call_operand.vmem [shape: f32[4,2], index: 1, kind: output, shape index: {}]
  // Predicated region
  $region2: #{tile.8} parent=0 // pred_check
    _
  $region3: #{tile.8} parent=0 // pred_check_branch
    %3 = sbr.rel (0) target = $region5
  $region4: #{tile.8} parent=0 // pred_region
    _
  $region5: #{tile.8} parent=0 // pred_fallthru
    _
  %v4 = vld [vmem:[%s0] ss:$0 sm:$0xff]
  %5 = vst [vmem:[%s1] sm:$0xf] %v4

// kernel: tile.9
$region0: #{tile.9}
  %s0 = inlined_call_operand.vmem [shape: f32[4,2], index: 0, kind: input, shape index: {}]
  %s1 = inlined_call_operand.vmem [shape: f32[1,8], index: 1, kind: output, shape index: {}]
  $region1: #{tile.9} parent=0
    #allocation0 [shape = 'u8[4096]{0}', space=vmem, size = 0x1000, scoped, tag = 'scoped mem for output reshape']
    #allocation1 [shape = 'u8[4096]{0}', space=vmem, size = 0x1000, scoped, tag = 'scoped mem for input reshape']
    %s3 = sshllo.u32 0, 4
    %v4 = vld [vmem:[%s0] sm:%s3]
    %5 = vst [vmem:[#allocation1] sm:%s3] %v4
    %v6 = vld [vmem:[#allocation1] sm:$0x1]
    %vm7 = vcmask 15360
    %8 = vst.msk [vmem:[#allocation0] sm:$0x1] %vm7, %v6
    %s9 = scalar_lea.vmem [#allocation1], 3
    %v10 = vld [vmem:[%s9] sm:$0x1]
    %11 = vrot.lane.b32.xlu0 %v10, 6
    %v12 = vpop.permute.xlu0 %11
    %vm13 = vcmask 64560
    %14 = vst.msk [vmem:[#allocation0] sm:$0x1] %vm13, %v12
    %s15 = scalar_lea.vmem [#allocation1], 2
    %v16 = vld [vmem:[%s15] sm:$0x1]
    %17 = vrot.lane.b32.xlu0 %v16, 4
    %v18 = vpop.permute.xlu0 %17
    %vm19 = vcmask 48160
    %20 = vst.msk [vmem:[#allocation0] sm:$0x1] %vm19, %v18
    %s21 = scalar_lea.vmem [#allocation1], 1
    %v22 = vld [vmem:[%s21] sm:$0x1]
    %23 = vrot.lane.b32.xlu0 %v22, 2
    %v24 = vpop.permute.xlu0 %23
    %vm25 = vcmask 31760
    %26 = vst.msk [vmem:[#allocation0] sm:$0x1] %vm25, %v24
    %s28 = sshllo.u32 0, 1
    %v30 = vld [vmem:[#allocation0] sm:%s28]
    %s31 = sshllo.u32 0, 1
    %32 = vst [vmem:[%s1] sm:%s31] %v30

// kernel: umerge_forward.1
$region0: #{umerge_forward.1}
  #allocation0 [shape = 'u32[]', space=smem, size = 0x4, offset = 0x4, fixed_abs, tag = 'smem constant byte address 0x4 - core index']
  #allocation1 [shape = 'u32[144,128]{1,0:T(1,128)}', space=vmem, size = 0x12000, scoped, tag = 'internal scratch']
  %s0 = inlined_call_operand.vmem [shape: f32[2,16,8,4], index: 0, kind: input, shape index: {}]
  %s1 = inlined_call_operand.vmem [shape: f32[2,64,4], index: 1, kind: input, shape index: {}]
  %s2 = inlined_call_operand.vmem [shape: f32[4,8], index: 2, kind: input, shape index: {}]
  %s3 = inlined_call_operand.vmem [shape: f32[1,8], index: 3, kind: input, shape index: {}]
  %s4 = inlined_call_operand.vmem [shape: f32[2,16,8,8], index: 4, kind: output, shape index: {}]
  %s5 = sld [smem:[#allocation0]]
  $region49: #{umerge_forward.1} parent=0
    _
  %s7 = ssub.s32 1, %s5
  %s8 = scalar_select 0, %s7, %s5
  loop: start=0, step=1, limit=4
  $region2: #{umerge_forward.1} parent=0 // loop_pre_header
    _
  $region3: #{umerge_forward.1} parent=0 // loop_header
    %s10 = sphi 0, %s14
    %p11 = scmp.ge.s32.totalorder %s10, 4
    %s17 = sphi 0, %s29
    %s18 = sphi 0, %s25
    %s19 = sphi 0, %s17
    %s20 = sphi 0, %s18
    %s21 = sphi 0, %s19
    %s22 = sphi 0, %s20
    %s34 = sphi 0, %s36
    %s37 = sphi 0, %s34
    %s38 = sphi 0, %s37
    %s54 = sphi 0, %s38
    %s62 = sphi 0, %s64
    %s65 = sphi 0, %s62
    %s66 = sphi 0, %s65
    %s82 = sphi 0, %s66
    %s86 = sphi 0, %s86
    %s88 = sphi 0, %s86
    %s89 = sphi 0, %s88
    %s103 = sphi 0, %s89
    %s107 = sphi 0, %s107
    %s109 = sphi 0, %s107
    %s110 = sphi 0, %s109
    %s124 = sphi 0, %s110
    %s132 = sphi 0, %s134
    %s135 = sphi 0, %s132
    %s136 = sphi 0, %s135
    %s152 = sphi 0, %s136
  $region4: #{umerge_forward.1} parent=0 // loop_header_branch
    %13 = sbr.rel (%p11) target = $region8
  $region5: #{umerge_forward.1} parent=0 // loop_body
    %s15 = ssub.s32 %s10, 1
    %s16 = ssub.s32 %s10, 2
    %s23 = sadd.s32 1, %s18
    %p24 = scmp.ge.s32.totalorder %s23, 1
    %s25 = scalar_select %p24, 0, %s23
    %s26 = sadd.s32 1, %s17
    %s27 = scalar_select %p24, %s26, %s17
    %p28 = scmp.ge.s32.totalorder %s27, 2
    %s29 = scalar_select %p28, 0, %s27
    %s30 = ssub.s32 %s17, %s29
    %s31 = ssub.s32 %s18, %s25
    %s32 = sor.u32 %s30, %s31
    %p33 = scmp.eq.s32.totalorder %s32, 0
    %s35 = sadd.s32 %s34, 1
    %s36 = scalar_select %p33, %s34, %s35
    %p39 = pneg %p33
    %p40 = scmp.eq.s32.totalorder %s10, 1
    %p41 = por %p39, %p40
    %p42 = scmp.ne.s32.totalorder %s34, %s37
    %p43 = scmp.eq.s32.totalorder %s10, 0
    %p44 = por %p42, %p43
    %p45 = scmp.ne.s32.totalorder %s34, %s37
    %p46 = scmp.eq.s32.totalorder %s15, 1
    %p47 = por %p45, %p46
    %p48 = scmp.ne.s32.totalorder %s37, %s38
    %p49 = scmp.eq.s32.totalorder %s15, 0
    %p50 = por %p48, %p49
    %p51 = scmp.ne.s32.totalorder %s37, %s38
    %p52 = scmp.eq.s32.totalorder %s16, 1
    %p53 = por %p51, %p52
    %p55 = scmp.ne.s32.totalorder %s38, %s54
    %p56 = scmp.eq.s32.totalorder %s16, 0
    %p57 = por %p55, %p56
    %s58 = ssub.s32 %s17, %s29
    %s59 = ssub.s32 %s18, %s25
    %s60 = sor.u32 %s58, %s59
    %p61 = scmp.eq.s32.totalorder %s60, 0
    %s63 = sadd.s32 %s62, 1
    %s64 = scalar_select %p61, %s62, %s63
    %p67 = pneg %p61
    %p68 = scmp.eq.s32.totalorder %s10, 1
    %p69 = por %p67, %p68
    %p70 = scmp.ne.s32.totalorder %s62, %s65
    %p71 = scmp.eq.s32.totalorder %s10, 0
    %p72 = por %p70, %p71
    %p73 = scmp.ne.s32.totalorder %s62, %s65
    %p74 = scmp.eq.s32.totalorder %s15, 1
    %p75 = por %p73, %p74
    %p76 = scmp.ne.s32.totalorder %s65, %s66
    %p77 = scmp.eq.s32.totalorder %s15, 0
    %p78 = por %p76, %p77
    %p79 = scmp.ne.s32.totalorder %s65, %s66
    %p80 = scmp.eq.s32.totalorder %s16, 1
    %p81 = por %p79, %p80
    %p83 = scmp.ne.s32.totalorder %s66, %s82
    %p84 = scmp.eq.s32.totalorder %s16, 0
    %p85 = por %p83, %p84
    %s87 = sadd.s32 %s86, 1
    %p90 = scmp.eq.s32.totalorder %s10, 1
    %p91 = scmp.ne.s32.totalorder %s86, %s88
    %p92 = scmp.eq.s32.totalorder %s10, 0
    %p93 = por %p91, %p92
    %p94 = scmp.ne.s32.totalorder %s86, %s88
    %p95 = scmp.eq.s32.totalorder %s15, 1
    %p96 = por %p94, %p95
    %p97 = scmp.ne.s32.totalorder %s88, %s89
    %p98 = scmp.eq.s32.totalorder %s15, 0
    %p99 = por %p97, %p98
    %p100 = scmp.ne.s32.totalorder %s88, %s89
    %p101 = scmp.eq.s32.totalorder %s16, 1
    %p102 = por %p100, %p101
    %p104 = scmp.ne.s32.totalorder %s89, %s103
    %p105 = scmp.eq.s32.totalorder %s16, 0
    %p106 = por %p104, %p105
    %s108 = sadd.s32 %s107, 1
    %p111 = scmp.eq.s32.totalorder %s10, 1
    %p112 = scmp.ne.s32.totalorder %s107, %s109
    %p113 = scmp.eq.s32.totalorder %s10, 0
    %p114 = por %p112, %p113
    %p115 = scmp.ne.s32.totalorder %s107, %s109
    %p116 = scmp.eq.s32.totalorder %s15, 1
    %p117 = por %p115, %p116
    %p118 = scmp.ne.s32.totalorder %s109, %s110
    %p119 = scmp.eq.s32.totalorder %s15, 0
    %p120 = por %p118, %p119
    %p121 = scmp.ne.s32.totalorder %s109, %s110
    %p122 = scmp.eq.s32.totalorder %s16, 1
    %p123 = por %p121, %p122
    %p125 = scmp.ne.s32.totalorder %s110, %s124
    %p126 = scmp.eq.s32.totalorder %s16, 0
    %p127 = por %p125, %p126
    %s128 = ssub.s32 %s17, %s29
    %s129 = ssub.s32 %s18, %s25
    %s130 = sor.u32 %s128, %s129
    %p131 = scmp.eq.s32.totalorder %s130, 0
    %s133 = sadd.s32 %s132, 1
    %s134 = scalar_select %p131, %s132, %s133
    %p137 = pneg %p131
    %p138 = scmp.eq.s32.totalorder %s10, 1
    %p139 = por %p137, %p138
    %p140 = scmp.ne.s32.totalorder %s132, %s135
    %p141 = scmp.eq.s32.totalorder %s10, 0
    %p142 = por %p140, %p141
    %p143 = scmp.ne.s32.totalorder %s132, %s135
    %p144 = scmp.eq.s32.totalorder %s15, 1
    %p145 = por %p143, %p144
    %p146 = scmp.ne.s32.totalorder %s135, %s136
    %p147 = scmp.eq.s32.totalorder %s15, 0
    %p148 = por %p146, %p147
    %p149 = scmp.ne.s32.totalorder %s135, %s136
    %p150 = scmp.eq.s32.totalorder %s16, 1
    %p151 = por %p149, %p150
    %p153 = scmp.ne.s32.totalorder %s136, %s152
    %p154 = scmp.eq.s32.totalorder %s16, 0
    %p155 = por %p153, %p154
    %p156 = scmp.le.s32.totalorder 1, %s10
    %p157 = scmp.lt.s32.totalorder %s10, 3
    %p158 = pnand %p156, %p157
    %p159 = pneg %p158
    // Predicated region
    $region9: #{umerge_forward.1} parent=5 // pred_check
      _
    $region10: #{umerge_forward.1} parent=5 // pred_check_branch
      %161 = sbr.rel (%p158) target = $region12
    $region11: #{umerge_forward.1} parent=5 // pred_region
      %s162 = ssub.s32 %s10, 1
      // Predicated region
      $region13: #{umerge_forward.1} parent=11 // pred_check
        %p163 = pneg %p99
      $region14: #{umerge_forward.1} parent=11 // pred_check_branch
        %165 = sbr.rel (%p163) target = $region16
      $region15: #{umerge_forward.1} parent=11 // pred_region
        _
      $region16: #{umerge_forward.1} parent=11 // pred_fallthru
        _
      // Predicated region
      $region17: #{umerge_forward.1} parent=11 // pred_check
        %p166 = pneg %p120
      $region18: #{umerge_forward.1} parent=11 // pred_check_branch
        %168 = sbr.rel (%p166) target = $region20
      $region19: #{umerge_forward.1} parent=11 // pred_region
        _
      $region20: #{umerge_forward.1} parent=11 // pred_fallthru
        _
    $region12: #{umerge_forward.1} parent=5 // pred_fallthru
      _
    %p169 = scmp.lt.s32.totalorder %s10, 2
    // Predicated region
    $region21: #{umerge_forward.1} parent=5 // pred_check
      %p170 = pneg %p169
    $region22: #{umerge_forward.1} parent=5 // pred_check_branch
      %172 = sbr.rel (%p170) target = $region24
    $region23: #{umerge_forward.1} parent=5 // pred_region
      // Predicated region
      $region25: #{umerge_forward.1} parent=23 // pred_check
        %p173 = pneg %p44
      $region26: #{umerge_forward.1} parent=23 // pred_check_branch
        %175 = sbr.rel (%p173) target = $region28
      $region27: #{umerge_forward.1} parent=23 // pred_region
        %s176 = smul.u32 16, %s18
        %p177 = scmp.lt.s32.totalorder %s17, 1
        %s178 = scalar_select %p177, %s17, 1
        %p179 = scmp.lt.s32.totalorder %s176, 15
        %s180 = scalar_select %p179, %s176, 15
        %s181 = smul.addr %s178, 16
        %s182 = sadd.s32 %s180, %s181
        %s183 = smul.addr %s182, 8
        %s184 = scalar_lea.vmem %s0, %s183
        %s185 = smul.u32 16, %s18
      $region28: #{umerge_forward.1} parent=23 // pred_fallthru
        _
      // Predicated region
      $region29: #{umerge_forward.1} parent=23 // pred_check
        %p186 = pneg %p72
      $region30: #{umerge_forward.1} parent=23 // pred_check_branch
        %188 = sbr.rel (%p186) target = $region32
      $region31: #{umerge_forward.1} parent=23 // pred_region
        %s189 = smul.u32 8, %s18
        %p190 = scmp.lt.s32.totalorder %s17, 1
        %s191 = scalar_select %p190, %s17, 1
        %p192 = scmp.lt.s32.totalorder %s189, 7
        %s193 = scalar_select %p192, %s189, 7
        %s194 = smul.addr %s191, 8
        %s195 = sadd.s32 %s193, %s194
        %s196 = smul.addr %s195, 8
        %s197 = scalar_lea.vmem %s1, %s196
        %s198 = smul.u32 8, %s18
      $region32: #{umerge_forward.1} parent=23 // pred_fallthru
        _
    $region24: #{umerge_forward.1} parent=5 // pred_fallthru
      _
    %p199 = scmp.le.s32.totalorder 1, %s10
    %p200 = scmp.lt.s32.totalorder %s10, 3
    %p201 = pnand %p199, %p200
    %p202 = pneg %p201
    // Predicated region
    $region33: #{umerge_forward.1} parent=5 // pred_check
      _
    $region34: #{umerge_forward.1} parent=5 // pred_check_branch
      %204 = sbr.rel (%p201) target = $region36
    $region35: #{umerge_forward.1} parent=5 // pred_region
      %s205 = ssub.s32 %s10, 1
      %s206 = smul.u32 16, %s20
      %p207 = scmp.lt.s32.totalorder %s19, 1
      %s208 = scalar_select %p207, %s19, 1
      %p209 = scmp.lt.s32.totalorder %s206, 15
      %s210 = scalar_select %p209, %s206, 15
      %s211 = smul.addr %s208, 16
      %s212 = sadd.s32 %s210, %s211
      %s213 = smul.addr %s212, 8
      %s214 = scalar_lea.vmem %s0, %s213
      %p215 = pneg %p50
      %p216 = pneg %p47
      %s217 = smul.u32 8, %s20
      %p218 = scmp.lt.s32.totalorder %s19, 1
      %s219 = scalar_select %p218, %s19, 1
      %p220 = scmp.lt.s32.totalorder %s217, 7
      %s221 = scalar_select %p220, %s217, 7
      %s222 = smul.addr %s219, 8
      %s223 = sadd.s32 %s221, %s222
      %s224 = smul.addr %s223, 8
      %s225 = scalar_lea.vmem %s1, %s224
      %p226 = pneg %p78
      %p227 = pneg %p75
      %p228 = pneg %p99
      %p229 = pneg %p96
      %p230 = pneg %p120
      %p231 = pneg %p117
      %p232 = pneg %p148
      %p233 = pneg %p145
      %s234 = smul.u32 16, %s20
      %p235 = scmp.lt.s32.totalorder %s19, 1
      %s236 = scalar_select %p235, %s19, 1
      %p237 = scmp.lt.s32.totalorder %s234, 15
      %s238 = scalar_select %p237, %s234, 15
      %s239 = smul.addr %s236, 16
      %s240 = sadd.s32 %s238, %s239
      %s241 = smul.addr %s240, 8
      %s242 = scalar_lea.vmem %s4, %s241
      %s243 = smul.u32 16, %s20
      %p244 = scmp.lt.s32.totalorder %s19, 1
      %s245 = scalar_select %p244, %s19, 1
      %p246 = scmp.lt.s32.totalorder %s243, 15
      %s247 = scalar_select %p246, %s243, 15
      %s248 = smul.addr %s245, 16
      %s249 = sadd.s32 %s247, %s248
      %s250 = smul.addr %s249, 8
      %s251 = scalar_lea.vmem %s0, %s250
      %s252 = smul.u32 16, %s20
      %s253 = smul.u32 8, %s20
      %p254 = scmp.lt.s32.totalorder %s19, 1
      %s255 = scalar_select %p254, %s19, 1
      %p256 = scmp.lt.s32.totalorder %s253, 7
      %s257 = scalar_select %p256, %s253, 7
      %s258 = smul.addr %s255, 8
      %s259 = sadd.s32 %s257, %s258
      %s260 = smul.addr %s259, 8
      %s261 = scalar_lea.vmem %s1, %s260
      %s262 = smul.u32 8, %s20
      %s263 = smul.u32 16, %s20
      %p264 = scmp.lt.s32.totalorder %s19, 1
      %s265 = scalar_select %p264, %s19, 1
      %p266 = scmp.lt.s32.totalorder %s263, 15
      %s267 = scalar_select %p266, %s263, 15
      %s268 = smul.addr %s265, 16
      %s269 = sadd.s32 %s267, %s268
      %s270 = smul.addr %s269, 8
      %s271 = scalar_lea.vmem %s4, %s270
      %s272 = smul.u32 16, %s20
      %v273 = vld [vmem:[%s261] sm:$0xff]
      %v274 = vld [vmem:[%s261 + $0x8] sm:$0xff]
      %v275 = vld [vmem:[%s261 + $0x10] sm:$0xff]
      %v276 = vld [vmem:[%s261 + $0x18] sm:$0xff]
      %v277 = vld [vmem:[%s261 + $0x20] sm:$0xff]
      %v278 = vld [vmem:[%s261 + $0x28] sm:$0xff]
      %v279 = vld [vmem:[%s261 + $0x30] sm:$0xff]
      %v280 = vld [vmem:[%s261 + $0x38] sm:$0xff]
      %v281 = vld [vmem:[%s2] sm:$0xf]
      %v282 = vld [vmem:[%s3] sm:$0x1]
      %v284 = vlaneseq
      %v285 = vshrl.u32 %v284, 7
      %v286 = vsub.s32 0, %v285
      %v287 = vrot.slane %v282, %v286
      %vm289 = vcmask 31744
      %v291 = vsel %vm289, %v273, 0
      %v294 = vsel %vm289, %v274, 0
      %v297 = vsel %vm289, %v275, 0
      %v300 = vsel %vm289, %v276, 0
      %v303 = vsel %vm289, %v277, 0
      %v306 = vsel %vm289, %v278, 0
      %v309 = vsel %vm289, %v279, 0
      %v312 = vsel %vm289, %v280, 0
      %vm314 = vcmask 1043456
      %v316 = vsel %vm314, %v281, 0
      %318 = vmatprep.subr.mxu0 0.0
      %319 = vmatpush1.msra.mxu0 %v316
      %320 = vmatprep.subr.mxu0 0.0
      %321 = vmatpush1.msra.mxu0 0.0
      %322 = vmatprep.subr.mxu0 0.0
      %323 = vmatpush1.msra.mxu0 0.0
      %324 = vmatprep.subr.mxu0 0.0
      %325 = vmatpush1.msra.mxu0 0.0
      %326 = vmatprep.subr.mxu0 0.0
      %327 = vmatpush1.msra.mxu0 0.0
      %328 = vmatprep.subr.mxu0 0.0
      %329 = vmatpush1.msra.mxu0 0.0
      %330 = vmatprep.subr.mxu0 0.0
      %331 = vmatpush1.msra.mxu0 0.0
      %332 = vmatprep.subr.mxu0 0.0
      %333 = vmatpush1.msra.mxu0 0.0
      %334 = vmatprep.subr.mxu0 0.0
      %335 = vmatpush1.msra.mxu0 0.0
      %336 = vmatprep.subr.mxu0 0.0
      %337 = vmatpush1.msra.mxu0 0.0
      %338 = vmatprep.subr.mxu0 0.0
      %339 = vmatpush1.msra.mxu0 0.0
      %340 = vmatprep.subr.mxu0 0.0
      %341 = vmatpush1.msra.mxu0 0.0
      %342 = vmatprep.subr.mxu0 0.0
      %343 = vmatpush1.msra.mxu0 0.0
      %344 = vmatprep.subr.mxu0 0.0
      %345 = vmatpush1.msra.mxu0 0.0
      %346 = vmatprep.subr.mxu0 0.0
      %347 = vmatpush1.msra.mxu0 0.0
      %348 = vmatprep.subr.mxu0 0.0
      %349 = vmatpush1.msra.mxu0 0.0
      %350 = vmatprep.subr.mxu0 0.0
      %351 = vmatpush1.msra.mxu0 0.0
      %352 = vmatprep.subr.mxu0 0.0
      %353 = vmatpush1.msra.mxu0 0.0
      %354 = vmatprep.subr.mxu0 0.0
      %355 = vmatpush1.msra.mxu0 0.0
      %356 = vmatprep.subr.mxu0 0.0
      %357 = vmatpush1.msra.mxu0 0.0
      %358 = vmatprep.subr.mxu0 0.0
      %359 = vmatpush1.msra.mxu0 0.0
      %360 = vmatprep.subr.mxu0 0.0
      %361 = vmatpush1.msra.mxu0 0.0
      %362 = vmatprep.subr.mxu0 0.0
      %363 = vmatpush1.msra.mxu0 0.0
      %364 = vmatprep.subr.mxu0 0.0
      %365 = vmatpush1.msra.mxu0 0.0
      %366 = vmatprep.subr.mxu0 0.0
      %367 = vmatpush1.msra.mxu0 0.0
      %368 = vmatprep.subr.mxu0 0.0
      %369 = vmatpush1.msra.mxu0 0.0
      %370 = vmatprep.subr.mxu0 0.0
      %371 = vmatpush1.msra.mxu0 0.0
      %372 = vmatprep.subr.mxu0 0.0
      %373 = vmatpush1.msra.mxu0 0.0
      %374 = vmatprep.subr.mxu0 0.0
      %375 = vmatpush1.msra.mxu0 0.0
      %376 = vmatprep.subr.mxu0 0.0
      %377 = vmatpush1.msra.mxu0 0.0
      %378 = vmatprep.subr.mxu0 0.0
      %379 = vmatpush1.msra.mxu0 0.0
      %380 = vmatprep.subr.mxu0 0.0
      %381 = vmatpush1.msra.mxu0 0.0
      %382 = vmatprep.mubr.f32.mxu0 0.0
      %383 = vmatmul.mubr.f32.gmra.mrb[0].mxu0 %v291
      %v384 = vpop.f32.mrb[0].mxu0
      %v385 = vadd.f32 %v287, %v384
      %v386 = vpop.f32.mrb[0].mxu0
      %387 = vmatprep.mubr.f32.mxu0 0.0
      %388 = vmatmul.mubr.f32.gmra.mrb[0].mxu0 %v294
      %v389 = vpop.f32.mrb[0].mxu0
      %v390 = vadd.f32 %v287, %v389
      %v391 = vpop.f32.mrb[0].mxu0
      %392 = vmatprep.mubr.f32.mxu0 0.0
      %393 = vmatmul.mubr.f32.gmra.mrb[0].mxu0 %v297
      %v394 = vpop.f32.mrb[0].mxu0
      %v395 = vadd.f32 %v287, %v394
      %v396 = vpop.f32.mrb[0].mxu0
      %397 = vmatprep.mubr.f32.mxu0 0.0
      %398 = vmatmul.mubr.f32.gmra.mrb[0].mxu0 %v300
      %v399 = vpop.f32.mrb[0].mxu0
      %v400 = vadd.f32 %v287, %v399
      %v401 = vpop.f32.mrb[0].mxu0
      %402 = vmatprep.mubr.f32.mxu0 0.0
      %403 = vmatmul.mubr.f32.gmra.mrb[0].mxu0 %v303
      %v404 = vpop.f32.mrb[0].mxu0
      %v405 = vadd.f32 %v287, %v404
      %v406 = vpop.f32.mrb[0].mxu0
      %407 = vmatprep.mubr.f32.mxu0 0.0
      %408 = vmatmul.mubr.f32.gmra.mrb[0].mxu0 %v306
      %v409 = vpop.f32.mrb[0].mxu0
      %v410 = vadd.f32 %v287, %v409
      %v411 = vpop.f32.mrb[0].mxu0
      %412 = vmatprep.mubr.f32.mxu0 0.0
      %413 = vmatmul.mubr.f32.gmra.mrb[0].mxu0 %v309
      %v414 = vpop.f32.mrb[0].mxu0
      %v415 = vadd.f32 %v287, %v414
      %v416 = vpop.f32.mrb[0].mxu0
      %417 = vmatprep.mubr.f32.mxu0 0.0
      %418 = vmatmul.mubr.f32.gmra.mrb[0].mxu0 %v312
      %v419 = vpop.f32.mrb[0].mxu0
      %v420 = vadd.f32 %v287, %v419
      %v421 = vpop.f32.mrb[0].mxu0
      %422 = vdwg.mxu0
      %v423 = vld [vmem:[%s251] sm:$0xff]
      %v424 = vld [vmem:[%s251 + $0x8] sm:$0xff]
      %v425 = vld [vmem:[%s251 + $0x10] sm:$0xff]
      %v426 = vld [vmem:[%s251 + $0x18] sm:$0xff]
      %v427 = vld [vmem:[%s251 + $0x20] sm:$0xff]
      %v428 = vld [vmem:[%s251 + $0x28] sm:$0xff]
      %v429 = vld [vmem:[%s251 + $0x30] sm:$0xff]
      %v430 = vld [vmem:[%s251 + $0x38] sm:$0xff]
      %v431 = vld [vmem:[%s251 + $0x40] sm:$0xff]
      %v432 = vld [vmem:[%s251 + $0x48] sm:$0xff]
      %v433 = vld [vmem:[%s251 + $0x50] sm:$0xff]
      %v434 = vld [vmem:[%s251 + $0x58] sm:$0xff]
      %v435 = vld [vmem:[%s251 + $0x60] sm:$0xff]
      %v436 = vld [vmem:[%s251 + $0x68] sm:$0xff]
      %v437 = vld [vmem:[%s251 + $0x70] sm:$0xff]
      %v438 = vld [vmem:[%s251 + $0x78] sm:$0xff]
      %447 = vrot.lane.b32.xlu0 %v385, 2
      %v448 = vpop.permute.xlu0 %447
      %449 = vrot.lane.b32.xlu0 %v390, 2
      %v450 = vpop.permute.xlu0 %449
      %451 = vrot.lane.b32.xlu0 %v395, 2
      %v452 = vpop.permute.xlu0 %451
      %453 = vrot.lane.b32.xlu0 %v400, 2
      %v454 = vpop.permute.xlu0 %453
      %455 = vrot.lane.b32.xlu0 %v405, 2
      %v456 = vpop.permute.xlu0 %455
      %457 = vrot.lane.b32.xlu0 %v410, 2
      %v458 = vpop.permute.xlu0 %457
      %459 = vrot.lane.b32.xlu0 %v415, 2
      %v460 = vpop.permute.xlu0 %459
      %461 = vrot.lane.b32.xlu0 %v420, 2
      %v462 = vpop.permute.xlu0 %461
      %479 = vrot.lane.b32.xlu0 %v423, 2
      %v480 = vpop.permute.xlu0 %479
      %481 = vrot.lane.b32.xlu0 %v425, 2
      %v482 = vpop.permute.xlu0 %481
      %483 = vrot.lane.b32.xlu0 %v427, 2
      %v484 = vpop.permute.xlu0 %483
      %485 = vrot.lane.b32.xlu0 %v429, 2
      %v486 = vpop.permute.xlu0 %485
      %487 = vrot.lane.b32.xlu0 %v431, 2
      %v488 = vpop.permute.xlu0 %487
      %489 = vrot.lane.b32.xlu0 %v433, 2
      %v490 = vpop.permute.xlu0 %489
      %491 = vrot.lane.b32.xlu0 %v435, 2
      %v492 = vpop.permute.xlu0 %491
      %493 = vrot.lane.b32.xlu0 %v437, 2
      %v494 = vpop.permute.xlu0 %493
      %503 = vrot.lane.b32.xlu0 %v385, 4
      %v504 = vpop.permute.xlu0 %503
      %505 = vrot.lane.b32.xlu0 %v390, 4
      %v506 = vpop.permute.xlu0 %505
      %507 = vrot.lane.b32.xlu0 %v395, 4
      %v508 = vpop.permute.xlu0 %507
      %509 = vrot.lane.b32.xlu0 %v400, 4
      %v510 = vpop.permute.xlu0 %509
      %511 = vrot.lane.b32.xlu0 %v405, 4
      %v512 = vpop.permute.xlu0 %511
      %513 = vrot.lane.b32.xlu0 %v410, 4
      %v514 = vpop.permute.xlu0 %513
      %515 = vrot.lane.b32.xlu0 %v415, 4
      %v516 = vpop.permute.xlu0 %515
      %517 = vrot.lane.b32.xlu0 %v420, 4
      %v518 = vpop.permute.xlu0 %517
      %vm527 = vcmask 15360
      %v528 = vsel %vm527, %v423, %v448
      %v529 = vsel %vm527, %v425, %v450
      %v530 = vsel %vm527, %v427, %v452
      %v531 = vsel %vm527, %v429, %v454
      %v532 = vsel %vm527, %v431, %v456
      %v533 = vsel %vm527, %v433, %v458
      %v534 = vsel %vm527, %v435, %v460
      %v535 = vsel %vm527, %v437, %v462
      %v536 = vsel %vm289, %v528, %v480
      %v537 = vsel %vm289, %v529, %v482
      %v538 = vsel %vm289, %v530, %v484
      %v539 = vsel %vm289, %v531, %v486
      %v540 = vsel %vm289, %v532, %v488
      %v541 = vsel %vm289, %v533, %v490
      %v542 = vsel %vm289, %v534, %v492
      %v543 = vsel %vm289, %v535, %v494
      %vm544 = vcmask 48128
      %v545 = vsel %vm544, %v536, %v504
      %v546 = vsel %vm544, %v537, %v506
      %v547 = vsel %vm544, %v538, %v508
      %v548 = vsel %vm544, %v539, %v510
      %v549 = vsel %vm544, %v540, %v512
      %v550 = vsel %vm544, %v541, %v514
      %v551 = vsel %vm544, %v542, %v516
      %v552 = vsel %vm544, %v543, %v518
      %553 = vrot.lane.b32.xlu0 %v385, 126
      %v554 = vpop.permute.xlu0 %553
      %555 = vrot.lane.b32.xlu0 %v390, 126
      %v556 = vpop.permute.xlu0 %555
      %557 = vrot.lane.b32.xlu0 %v395, 126
      %v558 = vpop.permute.xlu0 %557
      %559 = vrot.lane.b32.xlu0 %v400, 126
      %v560 = vpop.permute.xlu0 %559
      %561 = vrot.lane.b32.xlu0 %v405, 126
      %v562 = vpop.permute.xlu0 %561
      %563 = vrot.lane.b32.xlu0 %v410, 126
      %v564 = vpop.permute.xlu0 %563
      %565 = vrot.lane.b32.xlu0 %v415, 126
      %v566 = vpop.permute.xlu0 %565
      %567 = vrot.lane.b32.xlu0 %v420, 126
      %v568 = vpop.permute.xlu0 %567
      %585 = vrot.lane.b32.xlu0 %v424, 2
      %v586 = vpop.permute.xlu0 %585
      %587 = vrot.lane.b32.xlu0 %v426, 2
      %v588 = vpop.permute.xlu0 %587
      %589 = vrot.lane.b32.xlu0 %v428, 2
      %v590 = vpop.permute.xlu0 %589
      %591 = vrot.lane.b32.xlu0 %v430, 2
      %v592 = vpop.permute.xlu0 %591
      %593 = vrot.lane.b32.xlu0 %v432, 2
      %v594 = vpop.permute.xlu0 %593
      %595 = vrot.lane.b32.xlu0 %v434, 2
      %v596 = vpop.permute.xlu0 %595
      %597 = vrot.lane.b32.xlu0 %v436, 2
      %v598 = vpop.permute.xlu0 %597
      %599 = vrot.lane.b32.xlu0 %v438, 2
      %v600 = vpop.permute.xlu0 %599
      %v609 = vsel %vm527, %v424, %v554
      %v610 = vsel %vm527, %v426, %v556
      %v611 = vsel %vm527, %v428, %v558
      %v612 = vsel %vm527, %v430, %v560
      %v613 = vsel %vm527, %v432, %v562
      %v614 = vsel %vm527, %v434, %v564
      %v615 = vsel %vm527, %v436, %v566
      %v616 = vsel %vm527, %v438, %v568
      %v617 = vsel %vm289, %v609, %v586
      %v618 = vsel %vm289, %v610, %v588
      %v619 = vsel %vm289, %v611, %v590
      %v620 = vsel %vm289, %v612, %v592
      %v621 = vsel %vm289, %v613, %v594
      %v622 = vsel %vm289, %v614, %v596
      %v623 = vsel %vm289, %v615, %v598
      %v624 = vsel %vm289, %v616, %v600
      %v625 = vsel %vm544, %v617, %v385
      %v626 = vsel %vm544, %v618, %v390
      %v627 = vsel %vm544, %v619, %v395
      %v628 = vsel %vm544, %v620, %v400
      %v629 = vsel %vm544, %v621, %v405
      %v630 = vsel %vm544, %v622, %v410
      %v631 = vsel %vm544, %v623, %v415
      %v632 = vsel %vm544, %v624, %v420
      %vm633 = vcmask 64512
      %634 = vst.msk [vmem:[%s271] sm:$0xff] %vm633, %v545
      %635 = vst.msk [vmem:[%s271 + $0x8] sm:$0xff] %vm633, %v625
      %636 = vst.msk [vmem:[%s271 + $0x10] sm:$0xff] %vm633, %v546
      %637 = vst.msk [vmem:[%s271 + $0x18] sm:$0xff] %vm633, %v626
      %638 = vst.msk [vmem:[%s271 + $0x20] sm:$0xff] %vm633, %v547
      %639 = vst.msk [vmem:[%s271 + $0x28] sm:$0xff] %vm633, %v627
      %640 = vst.msk [vmem:[%s271 + $0x30] sm:$0xff] %vm633, %v548
      %641 = vst.msk [vmem:[%s271 + $0x38] sm:$0xff] %vm633, %v628
      %642 = vst.msk [vmem:[%s271 + $0x40] sm:$0xff] %vm633, %v549
      %643 = vst.msk [vmem:[%s271 + $0x48] sm:$0xff] %vm633, %v629
      %644 = vst.msk [vmem:[%s271 + $0x50] sm:$0xff] %vm633, %v550
      %645 = vst.msk [vmem:[%s271 + $0x58] sm:$0xff] %vm633, %v630
      %646 = vst.msk [vmem:[%s271 + $0x60] sm:$0xff] %vm633, %v551
      %647 = vst.msk [vmem:[%s271 + $0x68] sm:$0xff] %vm633, %v631
      %648 = vst.msk [vmem:[%s271 + $0x70] sm:$0xff] %vm633, %v552
      %649 = vst.msk [vmem:[%s271 + $0x78] sm:$0xff] %vm633, %v632
      %s650 = smul.u32 16, %s20
      %p651 = scmp.lt.s32.totalorder %s19, 1
      %s652 = scalar_select %p651, %s19, 1
      %p653 = scmp.lt.s32.totalorder %s650, 15
      %s654 = scalar_select %p653, %s650, 15
      %s655 = smul.addr %s652, 16
      %s656 = sadd.s32 %s654, %s655
      %s657 = smul.addr %s656, 8
      %s658 = scalar_lea.vmem %s4, %s657
      // Predicated region
      $region37: #{umerge_forward.1} parent=35 // pred_check
        %p659 = pneg %p145
      $region38: #{umerge_forward.1} parent=35 // pred_check_branch
        %661 = sbr.rel (%p659) target = $region40
      $region39: #{umerge_forward.1} parent=35 // pred_region
        %s662 = smul.u32 16, %s20
      $region40: #{umerge_forward.1} parent=35 // pred_fallthru
        _
    $region36: #{umerge_forward.1} parent=5 // pred_fallthru
      _
    %p663 = scmp.le.s32.totalorder 2, %s10
    // Predicated region
    $region41: #{umerge_forward.1} parent=5 // pred_check
      %p664 = pneg %p663
    $region42: #{umerge_forward.1} parent=5 // pred_check_branch
      %666 = sbr.rel (%p664) target = $region44
    $region43: #{umerge_forward.1} parent=5 // pred_region
      %s667 = ssub.s32 %s10, 2
      // Predicated region
      $region45: #{umerge_forward.1} parent=43 // pred_check
        %p668 = pneg %p151
      $region46: #{umerge_forward.1} parent=43 // pred_check_branch
        %670 = sbr.rel (%p668) target = $region48
      $region47: #{umerge_forward.1} parent=43 // pred_region
        %s671 = smul.u32 16, %s22
        %p672 = scmp.lt.s32.totalorder %s21, 1
        %s673 = scalar_select %p672, %s21, 1
        %p674 = scmp.lt.s32.totalorder %s671, 15
        %s675 = scalar_select %p674, %s671, 15
        %s676 = smul.addr %s673, 16
        %s677 = sadd.s32 %s675, %s676
        %s678 = smul.addr %s677, 8
        %s679 = scalar_lea.vmem %s4, %s678
      $region48: #{umerge_forward.1} parent=43 // pred_fallthru
        _
    $region44: #{umerge_forward.1} parent=5 // pred_fallthru
      _
  $region6: #{umerge_forward.1} parent=0 // loop_footer
    %s14 = sadd.s32 1, %s10
  $region7: #{umerge_forward.1} parent=0 // loop_footer_branch
    %9 = sbr.rel target = $region3
  $region8: #{umerge_forward.1} parent=0 // loop_exit
    _

</llo_original>
